<compile_context>
chip_gen: v6e
topology: v6e:2x2x1
jax: 0.10.0
libtpu: 0.0.40
codegen_flags: <defaults>
</compile_context>

<pallas_src>
import math

import jax
import jax.numpy as jnp
from jax.experimental import pallas as pl
from jax.experimental.pallas import tpu as pltpu


def _round_up(x, m):
    return ((x + m - 1) // m) * m


def _make_payload_kernel(num_groups, use_scratch):
    """out = sum_g emb_g @ W_g + bias for one row tile.

    refs = (emb_0..emb_{G-1}, w_0..w_{G-1}, bias, out[, acc_scratch])
      emb_g : (tile_n, dim_g)  input dtype (cast to bf16 for the MXU)
      w_g   : (dim_g, H)       bf16, resident across the grid
      bias  : (1, H)           f32, resident across the grid
      out   : (tile_n, H)      f32 or bf16
      acc   : (tile_n, H)      f32 scratch (only when out is not f32)
    """

    def kernel(*refs):
        emb_refs = refs[:num_groups]
        w_refs = refs[num_groups:2 * num_groups]
        b_ref = refs[2 * num_groups]
        out_ref = refs[2 * num_groups + 1]
        acc_ref = refs[2 * num_groups + 2] if use_scratch else out_ref

        acc_ref[...] = b_ref[...] + jnp.dot(
            emb_refs[0][...].astype(jnp.bfloat16),
            w_refs[0][...],
            preferred_element_type=jnp.float32,
        )
        for g in range(1, num_groups):
            acc_ref[...] += jnp.dot(
                emb_refs[g][...].astype(jnp.bfloat16),
                w_refs[g][...],
                preferred_element_type=jnp.float32,
            )
        if use_scratch:
            out_ref[...] = acc_ref[...].astype(out_ref.dtype)

    return kernel


def _pick_tile_and_vmem(n_rows, group_dim_itemsize, hidden, out_itemsize,
                        use_scratch):
    """Row-tile size + explicit scoped-VMEM limit, lane-padding aware."""
    lane_h = _round_up(hidden, 128)

    # VMEM bytes per tile row: double-buffered inputs/outputs, lane padded.
    row_bytes = sum(2 * _round_up(d, 128) * isz for d, isz in group_dim_itemsize)
    row_bytes += 2 * lane_h * out_itemsize
    if use_scratch:
        row_bytes += lane_h * 4  # f32 accumulator (single-buffered scratch)

    # Resident operands: bf16 weight slices (worst-case double-buffered) + bias.
    resident = sum(2 * _round_up(d, 16) * lane_h * 2 for d, _ in group_dim_itemsize)
    resident += 2 * 8 * lane_h * 4

    try:
        phys = int(pltpu.get_tpu_info().vmem_capacity_bytes)
    except Exception:  # pragma: no cover - conservative fallback (v7x-sized)
        phys = 64 << 20
    # >=16 MiB headroom for compiler scratch/semaphores; never ask above 96 MiB.
    safe_cap = min(max(phys - (16 << 20), 16 << 20), 96 << 20)

    # Budget for the pipelined row tiles themselves (v6e/v5e measured sweet
    # spot is 512-1024 rows; 32 MiB is plenty even for large total_dim+hidden).
    tile_budget = min(max(safe_cap - resident - (4 << 20), 4 << 20), 32 << 20)

    tile_n = int(tile_budget // max(row_bytes, 1))
    tile_n = max(16, min(2048, (tile_n // 16) * 16))
    # Keep >= ~8 grid steps when rows allow it (v7x: 2 TCs share the grid).
    tile_n = min(tile_n, max(16, _round_up(pl.cdiv(n_rows, 8), 16)))
    tile_n = min(tile_n, max(16, _round_up(n_rows, 16)))

    need = tile_n * row_bytes + resident + (2 << 20)
    vmem_limit = int(min(max(2 * need, 32 << 20), safe_cap))
    return tile_n, vmem_limit


def _project_embedding_pallas(emb_ops, w_groups, bias_2d, hidden, out_dtype):
    """emb_ops: list of (N, dim_g); w_groups: list of (dim_g, hidden) bf16;
    bias_2d: (1, hidden) f32. Returns (N, hidden) out_dtype."""
    n_rows = emb_ops[0].shape[0]
    num_groups = len(emb_ops)
    use_scratch = jnp.dtype(out_dtype) != jnp.dtype(jnp.float32)
    out_itemsize = jnp.dtype(out_dtype).itemsize

    tile_n, vmem_limit = _pick_tile_and_vmem(
        n_rows,
        [(op.shape[1], op.dtype.itemsize) for op in emb_ops],
        hidden,
        out_itemsize,
        use_scratch,
    )
    num_tiles = pl.cdiv(n_rows, tile_n)  # ragged last block handled by Pallas

    in_specs = (
        [pl.BlockSpec((tile_n, op.shape[1]), lambda i: (i, 0)) for op in emb_ops]
        + [pl.BlockSpec(tuple(w.shape), lambda i: (0, 0)) for w in w_groups]
        + [pl.BlockSpec((1, hidden), lambda i: (0, 0))]
    )
    out_spec = pl.BlockSpec((tile_n, hidden), lambda i: (i, 0))
    scratch_shapes = (
        [pltpu.VMEM((tile_n, hidden), jnp.float32)] if use_scratch else []
    )

    total_dim = sum(op.shape[1] for op in emb_ops)
    cost = pl.CostEstimate(
        flops=2 * n_rows * total_dim * hidden,
        transcendentals=0,
        bytes_accessed=(
            sum(op.size * op.dtype.itemsize for op in emb_ops)
            + sum(w.size * 2 for w in w_groups)
            + hidden * 4
            + n_rows * hidden * out_itemsize
        ),
    )

    return pl.pallas_call(
        _make_payload_kernel(num_groups, use_scratch),
        out_shape=jax.ShapeDtypeStruct((n_rows, hidden), out_dtype),
        grid=(num_tiles,),
        in_specs=in_specs,
        out_specs=out_spec,
        scratch_shapes=scratch_shapes,
        compiler_params=pltpu.CompilerParams(
            dimension_semantics=("parallel",),
            vmem_limit_bytes=vmem_limit,
        ),
        cost_estimate=cost,
    )(*emb_ops, *w_groups, bias_2d)


class EmbeddingPayloadBasePallas:
    """JAX/Pallas re-implementation of bootleg's EmbeddingPayloadBase."""

    def __init__(self, K, M, hidden_size, total_sizes, key,
                 out_dtype=jnp.float32):
        self.K = K
        self.M = M
        self.hidden_size = hidden_size
        self.dims = tuple(int(d) for d in total_sizes)
        self.total_dim = sum(self.dims)
        self.out_dtype = out_dtype
        # TODO(synk): position_enc is an empty ModuleDict in the base module and
        # start/end span indices are unused in the base forward; nothing to port.

        # project_embedding == Linear(total_dim -> hidden_size), no activation.
        kw, kb = jax.random.split(key)
        bound = 1.0 / math.sqrt(self.total_dim)
        w = jax.random.uniform(
            kw, (self.hidden_size, self.total_dim), jnp.float32, -bound, bound
        )  # PyTorch Linear layout (out, in)
        b = jax.random.uniform(kb, (self.hidden_size,), jnp.float32, -bound, bound)
        self.weight_t = jnp.transpose(w)          # (total_dim, hidden), f32 ref
        self.bias = b                             # (hidden,), f32
        self.bias_2d = b.reshape(1, self.hidden_size)

        # Precompute operand grouping keyed by total_sizes: lane-sparse
        # embeddings (dim < 128) are merged into one operand; each large dim
        # (>= 128) stays its own operand with its own resident weight slice.
        small = [i for i, d in enumerate(self.dims) if d < 128]
        large = [i for i, d in enumerate(self.dims) if d >= 128]
        self.groups = ([small] if small else []) + [[i] for i in large]

        offs = [0]
        for d in self.dims:
            offs.append(offs[-1] + d)
        w_bf16 = self.weight_t.astype(jnp.bfloat16)   # (total_dim, hidden)
        self.group_weights = []
        for g in self.groups:
            rows = [w_bf16[offs[i]:offs[i] + self.dims[i], :] for i in g]
            self.group_weights.append(
                rows[0] if len(rows) == 1 else jnp.concatenate(rows, axis=0)
            )

    def forward(self, start_span_idx, end_span_idx, *embedding_args):
        batch_size = start_span_idx.shape[0]
        emb_list = []
        for embedding_tensor in embedding_args:
            if embedding_tensor is None:
                continue
            assert embedding_tensor.shape[0] == batch_size
            assert embedding_tensor.shape[1] == self.M
            assert embedding_tensor.shape[2] == self.K
            emb_list.append(embedding_tensor)

        if len(emb_list) > 1:
            assert len(emb_list) == len(self.dims), (
                "non-None embeddings must match total_sizes in order")
            for e, d in zip(emb_list, self.dims):
                assert e.shape[-1] == d, (e.shape, d)

            B, M, K = batch_size, self.M, self.K
            n_rows = B * M * K

            # Build per-group operands (reshape is metadata-only; only the
            # small-dim concat touches HBM, and those bytes are small).
            group_ops = []
            for g in self.groups:
                flats = [emb_list[i].reshape(n_rows, self.dims[i]) for i in g]
                group_ops.append(
                    flats[0] if len(flats) == 1
                    else jnp.concatenate(flats, axis=-1)
                )

            out_flat = _project_embedding_pallas(
                group_ops, self.group_weights, self.bias_2d,
                self.hidden_size, self.out_dtype,
            )
            embedding_payload = out_flat.reshape(B, M, K, self.hidden_size)
        else:
            embedding_payload = emb_list[0]
        return embedding_payload


if __name__ == "__main__":
    key = jax.random.PRNGKey(0)
    k_param, k_e0, k_e1 = jax.random.split(key, 3)

    # --- Case 1: two small embeddings (grouped into one operand), f32 out ---
    B, M, K = 2, 2, 4
    dims = (16, 16)            # total_dim = 32
    hidden = 32

    module = EmbeddingPayloadBasePallas(
        K=K, M=M, hidden_size=hidden, total_sizes=dims, key=k_param
    )

    start_span_idx = jnp.zeros((B, M), dtype=jnp.int32)
    end_span_idx = jnp.zeros((B, M), dtype=jnp.int32)
    emb0 = jax.random.normal(k_e0, (B, M, K, dims[0]), dtype=jnp.float32)
    emb1 = jax.random.normal(k_e1, (B, M, K, dims[1]), dtype=jnp.float32)

    out = module.forward(start_span_idx, end_span_idx, emb0, None, emb1)
    out = jax.block_until_ready(out)
    assert out.shape == (B, M, K, hidden), out.shape

    ref = (
        jnp.concatenate([emb0, emb1], axis=-1).reshape(-1, sum(dims))
        @ module.weight_t
        + module.bias
    ).reshape(B, M, K, hidden)
    assert jnp.allclose(out, ref, atol=5e-2, rtol=5e-2), float(
        jnp.max(jnp.abs(out - ref))
    )

    # --- Case 2: ragged last grid block (N = 3*2*4 = 24, tile_n = 16) ---
    B2 = 3
    start2 = jnp.zeros((B2, M), dtype=jnp.int32)
    end2 = jnp.zeros((B2, M), dtype=jnp.int32)
    e0 = jax.random.normal(jax.random.PRNGKey(1), (B2, M, K, dims[0]), jnp.float32)
    e1 = jax.random.normal(jax.random.PRNGKey(2), (B2, M, K, dims[1]), jnp.float32)
    out2 = jax.block_until_ready(module.forward(start2, end2, e0, e1))
    ref2 = (
        jnp.concatenate([e0, e1], axis=-1).reshape(-1, sum(dims)) @ module.weight_t
        + module.bias
    ).reshape(B2, M, K, hidden)
    assert out2.shape == (B2, M, K, hidden)
    assert jnp.allclose(out2, ref2, atol=5e-2, rtol=5e-2)

    # --- Case 3: mixed small + large dims -> multi-group accumulation ---
    dims3 = (8, 256)
    hidden3 = 64
    module3 = EmbeddingPayloadBasePallas(
        K=K, M=M, hidden_size=hidden3, total_sizes=dims3,
        key=jax.random.PRNGKey(3),
    )
    f0 = jax.random.normal(jax.random.PRNGKey(4), (B, M, K, dims3[0]), jnp.float32)
    f1 = jax.random.normal(jax.random.PRNGKey(5), (B, M, K, dims3[1]), jnp.float32)
    out3 = jax.block_until_ready(module3.forward(start_span_idx, end_span_idx, f0, f1))
    ref3 = (
        jnp.concatenate([f0, f1], axis=-1).reshape(-1, sum(dims3))
        @ module3.weight_t + module3.bias
    ).reshape(B, M, K, hidden3)
    assert out3.shape == (B, M, K, hidden3)
    assert jnp.allclose(out3, ref3, atol=5e-2, rtol=5e-2), float(
        jnp.max(jnp.abs(out3 - ref3))
    )

    # --- Case 4: bf16 output path (f32 VMEM scratch accumulator) ---
    module_bf16 = EmbeddingPayloadBasePallas(
        K=K, M=M, hidden_size=hidden, total_sizes=dims, key=k_param,
        out_dtype=jnp.bfloat16,
    )
    out_bf16 = jax.block_until_ready(
        module_bf16.forward(start_span_idx, end_span_idx, emb0, emb1)
    )
    assert out_bf16.dtype == jnp.bfloat16
    assert jnp.allclose(out_bf16.astype(jnp.float32), ref, atol=1e-1, rtol=1e-1)

    # --- Case 5: single-embedding passthrough (no kernel, per module spec) ---
    out_single = module.forward(start_span_idx, end_span_idx, emb0)
    assert out_single.shape == (B, M, K, dims[0])

    print("KERNEL_OK")
</pallas_src>

<mosaic_0001>
module attributes {stable_mosaic.version = 11 : i64} {
  func.func @kernel(%arg0: i32, %arg1: memref<16x32xf32, #tpu.memory_space<vmem>>, %arg2: memref<32x32xbf16, #tpu.memory_space<vmem>>, %arg3: memref<1x32xf32, #tpu.memory_space<vmem>>, %arg4: memref<16x32xf32, #tpu.memory_space<vmem>>) attributes {dimension_semantics = [#tpu.dimension_semantics<parallel>], iteration_bounds = array<i64: 1>, scalar_prefetch = 0 : i64, scratch_operands = 0 : i64, tpu.core_type = #tpu.core_type<tc>, window_params = [{transform_indices = @transform_0, window_bounds = array<i64: 16, 32>}, {pipeline_mode = #tpu.pipeline_mode<synchronous>, transform_indices = @transform_1, window_bounds = array<i64: 32, 32>}, {pipeline_mode = #tpu.pipeline_mode<synchronous>, transform_indices = @transform_2, window_bounds = array<i64: 1, 32>}, {transform_indices = @transform_3, window_bounds = array<i64: 16, 32>}]} {
    %c0 = arith.constant 0 : index
    %c0_0 = arith.constant 0 : index
    %0 = vector.load %arg3[%c0, %c0_0] : memref<1x32xf32, #tpu.memory_space<vmem>>, vector<1x32xf32>
    %c0_1 = arith.constant 0 : index
    %c0_2 = arith.constant 0 : index
    %1 = vector.load %arg1[%c0_1, %c0_2] : memref<16x32xf32, #tpu.memory_space<vmem>>, vector<16x32xf32>
    %2 = arith.truncf %1 : vector<16x32xf32> to vector<16x32xbf16>
    %c0_3 = arith.constant 0 : index
    %c0_4 = arith.constant 0 : index
    %3 = vector.load %arg2[%c0_3, %c0_4] : memref<32x32xbf16, #tpu.memory_space<vmem>>, vector<32x32xbf16>
    %cst = arith.constant dense<0.000000e+00> : vector<16x32xf32>
    %4 = tpu.matmul %2, %3, %cst {dimension_numbers = #tpu.dot_dimension_numbers<[1], [0], [0], [1], [0, 0, 1, 1], [], []>} : vector<16x32xbf16>, vector<32x32xbf16>, vector<16x32xf32> -> vector<16x32xf32>
    %5 = vector.broadcast %0 : vector<1x32xf32> to vector<16x32xf32>
    %6 = arith.addf %5, %4 : vector<16x32xf32>
    %c0_5 = arith.constant 0 : index
    %c0_6 = arith.constant 0 : index
    %7 = vector.load %arg4[%c0_5, %c0_6] : memref<16x32xf32, #tpu.memory_space<vmem>>, vector<16x32xf32>
    tpu.vector_store %arg4[%c0_5, %c0_6], %6 {strides = array<i32>} : memref<16x32xf32, #tpu.memory_space<vmem>>, vector<16x32xf32>,
    return
  }
  func.func @transform_0(%arg0: i32) -> (i32, i32) {
    %c0_i32 = arith.constant 0 : i32
    %c0_i32_0 = arith.constant 0 : i32
    return %arg0, %c0_i32 : i32, i32
  }
  func.func @transform_1(%arg0: i32) -> (i32, i32) {
    %c0_i32 = arith.constant 0 : i32
    %c0_i32_0 = arith.constant 0 : i32
    %c0_i32_1 = arith.constant 0 : i32
    return %c0_i32, %c0_i32_0 : i32, i32
  }
  func.func @transform_2(%arg0: i32) -> (i32, i32) {
    %c0_i32 = arith.constant 0 : i32
    %c0_i32_0 = arith.constant 0 : i32
    %c0_i32_1 = arith.constant 0 : i32
    return %c0_i32, %c0_i32_0 : i32, i32
  }
  func.func @transform_3(%arg0: i32) -> (i32, i32) {
    %c0_i32 = arith.constant 0 : i32
    %c0_i32_0 = arith.constant 0 : i32
    return %arg0, %c0_i32 : i32, i32
  }
}

</mosaic_0001>

<llo_original>
// kernel: tpu_custom_call.1
$region0: #{tpu_custom_call.1}
  #allocation0 [shape = 'u32[]', space=smem, size = 0x4, offset = 0x4, fixed_abs, tag = 'smem constant byte address 0x4 - core index']
  #allocation1 [shape = 'u32[144,128]{1,0:T(1,128)}', space=vmem, size = 0x12000, scoped, tag = 'internal scratch']
  %s0 = inlined_call_operand.hbm [shape: f32[16,32], index: 0, kind: input, shape index: {}]
  %s1 = inlined_call_operand.hbm [shape: bf16[32,32], index: 1, kind: input, shape index: {}]
  %s2 = inlined_call_operand.vmem [shape: f32[1,32], index: 2, kind: input, shape index: {}]
  %s3 = inlined_call_operand.hbm [shape: f32[16,32], index: 3, kind: output, shape index: {}]
  %s4 = sld [smem:[#allocation0]]
  $region30: #{tpu_custom_call.1} parent=0
    _
  %s6 = ssub.s32 1, %s4
  %s7 = scalar_select 0, %s6, %s4
  $region1: #{tpu_custom_call.1} parent=0
    #allocation2 [shape = 'u8[8192]{0}', space=vmem, size = 0x2000, scoped, tag = 'input window, operand 0, single buffered']
    #allocation3 [shape = 's32[1]{0}', space=sflag, size = 0x4, scoped, tag = 'scoped memory for tpu_custom_call.1']
    #allocation4 [shape = 's32[1]{0}', space=sflag, size = 0x4, scoped, tag = 'scoped memory for tpu_custom_call.1']
    #allocation5 [shape = 'u8[8192]{0}', space=vmem, size = 0x2000, scoped, tag = 'input window, operand 1, single buffered']
    #allocation6 [shape = 's32[1]{0}', space=sflag, size = 0x4, scoped, tag = 'scoped memory for tpu_custom_call.1']
    #allocation7 [shape = 'u8[8192]{0}', space=vmem, size = 0x2000, scoped, tag = 'output window, operand 0, single buffered']
    %8 = vsyncpa [#allocation3], 0
    %9 = vsyncpa [#allocation6], 0
    %10 = vsyncpa [#allocation4], 0
    // Predicated region
    $region2: #{tpu_custom_call.1} parent=1 // pred_check
      _
    $region3: #{tpu_custom_call.1} parent=1 // pred_check_branch
      %12 = sbr.rel (0) target = $region5
    $region4: #{tpu_custom_call.1} parent=1 // pred_region
      %s14 = ssub.s32 256, 256
      %15 = vsyncadd [#allocation3], %s14
      %s16 = sshll.u32 [#allocation2], 4
      %s17 = int_to_ptr.vmem [resolvable:$true] %s16
      %22 = dma.hbm_to_vmem [thread:$0]  %s0, 256, %s17, [#allocation3], 128, 128, 8
    $region5: #{tpu_custom_call.1} parent=1 // pred_fallthru
      _
    // Predicated region
    $region6: #{tpu_custom_call.1} parent=1 // pred_check
      _
    $region7: #{tpu_custom_call.1} parent=1 // pred_check_branch
      %24 = sbr.rel (0) target = $region9
    $region8: #{tpu_custom_call.1} parent=1 // pred_region
      %s26 = ssub.s32 256, 256
      %27 = vsyncadd [#allocation6], %s26
      %s28 = sshll.u32 [#allocation5], 4
      %s29 = int_to_ptr.vmem [resolvable:$true] %s28
      %34 = dma.hbm_to_vmem [thread:$0]  %s1, 256, %s29, [#allocation6], 64, 64, 4
    $region9: #{tpu_custom_call.1} parent=1 // pred_fallthru
      _
    // Predicated region
    $region10: #{tpu_custom_call.1} parent=1 // pred_check
      _
    $region11: #{tpu_custom_call.1} parent=1 // pred_check_branch
      %36 = sbr.rel (0) target = $region13
    $region12: #{tpu_custom_call.1} parent=1 // pred_region
      _
    $region13: #{tpu_custom_call.1} parent=1 // pred_fallthru
      _
    // Predicated region
    $region14: #{tpu_custom_call.1} parent=1 // pred_check
      _
    $region15: #{tpu_custom_call.1} parent=1 // pred_check_branch
      %38 = sbr.rel (0) target = $region17
    $region16: #{tpu_custom_call.1} parent=1 // pred_region
      %39 = dma.done [#allocation3], 256
    $region17: #{tpu_custom_call.1} parent=1 // pred_fallthru
      _
    // Predicated region
    $region18: #{tpu_custom_call.1} parent=1 // pred_check
      _
    $region19: #{tpu_custom_call.1} parent=1 // pred_check_branch
      %41 = sbr.rel (0) target = $region21
    $region20: #{tpu_custom_call.1} parent=1 // pred_region
      %42 = dma.done [#allocation6], 256
    $region21: #{tpu_custom_call.1} parent=1 // pred_fallthru
      _
    %v44 = vld [vmem:[%s2] sm:$0x1]
    %v45 = vld [vmem:[#allocation2] sm:$0xff]
    %v46 = vld [vmem:[#allocation2 + $0x8] sm:$0xff]
    %v47 = vpack.c.bf16 %v46, %v45
    %v48 = vld [vmem:[#allocation5] sm:$0xf]
    %v49 = vld [vmem:[#allocation5 + $0x4] sm:$0xf]
    %v50 = vld [vmem:[#allocation5 + $0x8] sm:$0xf]
    %v51 = vld [vmem:[#allocation5 + $0xc] sm:$0xf]
    %v56 = vunpack.c.l.b16 %v48
    %v57 = vunpack.c.l.b16 %v49
    %v58 = vunpack.c.l.b16 %v50
    %v59 = vunpack.c.l.b16 %v51
    %v60 = vpack.c.b16 %v57, %v56
    %v61 = vpack.c.b16 %v59, %v58
    %vm64 = vcmask 261120
    %v66 = vsel %vm64, %v47, 0
    %68 = vmatprep.subr.bf16.mxu0 0
    %69 = vmatpush1.bf16.msra.mxu0 0
    %70 = vmatprep.subr.bf16.mxu0 0
    %71 = vmatpush1.bf16.msra.mxu0 0
    %72 = vmatprep.subr.bf16.mxu0 0
    %73 = vmatpush1.bf16.msra.mxu0 0
    %74 = vmatprep.subr.bf16.mxu0 0
    %75 = vmatpush1.bf16.msra.mxu0 0
    %76 = vmatprep.subr.bf16.mxu0 0
    %77 = vmatpush1.bf16.msra.mxu0 0
    %78 = vmatprep.subr.bf16.mxu0 0
    %79 = vmatpush1.bf16.msra.mxu0 0
    %80 = vmatprep.subr.bf16.mxu0 0
    %81 = vmatpush1.bf16.msra.mxu0 %v61
    %82 = vmatprep.subr.bf16.mxu0 0
    %83 = vmatpush1.bf16.msra.mxu0 %v60
    %84 = vmatprep.subr.bf16.mxu0 0
    %85 = vmatpush2.bf16.msra.mxu0 0
    %86 = vmatprep.subr.bf16.mxu0 0
    %87 = vmatpush2.bf16.msra.mxu0 0
    %88 = vmatprep.subr.bf16.mxu0 0
    %89 = vmatpush2.bf16.msra.mxu0 0
    %90 = vmatprep.subr.bf16.mxu0 0
    %91 = vmatpush2.bf16.msra.mxu0 0
    %92 = vmatprep.subr.bf16.mxu0 0
    %93 = vmatpush2.bf16.msra.mxu0 0
    %94 = vmatprep.subr.bf16.mxu0 0
    %95 = vmatpush2.bf16.msra.mxu0 0
    %96 = vmatprep.subr.bf16.mxu0 0
    %97 = vmatpush2.bf16.msra.mxu0 0
    %98 = vmatprep.subr.bf16.mxu0 0
    %99 = vmatpush2.bf16.msra.mxu0 0
    %100 = vmatprep.mubr.bf16.mxu0 0
    %101 = vmatmul.mubr.bf16.gmra.mxu0 %v66
    %v102 = vpop.f32.mrf.mxu0
    %v103 = vadd.f32 0.0, %v102
    %v104 = vpop.f32.mrf.mxu0
    %v105 = vpop.f32.mrf.mxu0
    %v106 = vadd.f32 0.0, %v105
    %v107 = vpop.f32.mrf.mxu0
    %108 = vdwg.mxu0
    %v110 = vlaneseq
    %v111 = vshrl.u32 %v110, 7
    %v112 = vsub.s32 0, %v111
    %v113 = vrot.slane %v44, %v112
    %v115 = vadd.f32 %v113, %v103
    %v116 = vadd.f32 %v113, %v106
    %117 = vst.msk [vmem:[#allocation7] sm:$0xff] %vm64, %v115
    %118 = vst.msk [vmem:[#allocation7 + $0x8] sm:$0xff] %vm64, %v116
    // Predicated region
    $region22: #{tpu_custom_call.1} parent=1 // pred_check
      _
    $region23: #{tpu_custom_call.1} parent=1 // pred_check_branch
      %120 = sbr.rel (0) target = $region25
    $region24: #{tpu_custom_call.1} parent=1 // pred_region
      %s122 = ssub.s32 256, 256
      %123 = vsyncadd [#allocation4], %s122
      %s124 = sshll.u32 [#allocation7], 4
      %s125 = int_to_ptr.vmem [resolvable:$true] %s124
      %130 = dma.vmem_to_hbm [thread:$0]  %s125, 256, %s3, [#allocation4], 128, 128, 8
    $region25: #{tpu_custom_call.1} parent=1 // pred_fallthru
      _
    // Predicated region
    $region26: #{tpu_custom_call.1} parent=1 // pred_check
      _
    $region27: #{tpu_custom_call.1} parent=1 // pred_check_branch
      %132 = sbr.rel (0) target = $region29
    $region28: #{tpu_custom_call.1} parent=1 // pred_region
      %133 = dma.done [#allocation4], 256
    $region29: #{tpu_custom_call.1} parent=1 // pred_fallthru
      _
    %134 = vsyncpa [#allocation3], 1
    %135 = vsyncpa [#allocation6], 1
    %136 = vsyncpa [#allocation4], 1

</llo_original>
